<compile_context>
chip_gen: v6e
topology: v6e:2x2x1
jax: 0.10.0
libtpu: 0.0.40
codegen_flags: <defaults>
</compile_context>

<pallas_src>
import functools
import numpy as np
import jax
import jax.numpy as jnp
from jax.experimental import pallas as pl
from jax.experimental.pallas import tpu as pltpu

# group feature slice widths: AtomicNum..NumRadicalElectrons
GROUP_DIMS = (12, 6, 5, 6, 5, 1, 1, 1, 1)
N_FEAT = sum(GROUP_DIMS)          # 38
N_GROUPS = len(GROUP_DIMS)        # 9
OUT_LANES = 16                    # fused output: [out | att(9) | pad(6)]


def _attention_kernel(x_ref, a_ref, xwn_ref, wpack_ref, gv_ref, o_ref, acc_ref):
    k = pl.program_id(1)

    @pl.when(k == 0)
    def _init():
        acc_ref[...] = jnp.zeros_like(acc_ref)

    # Reassociated GIN neighbour term for this (row, neighbour) tile:
    #   acc += A[i-tile, k-tile] @ (x @ (w1 * bn_scale))[k-tile]        -> [TM, 9]
    a = a_ref[...].astype(jnp.float32)          # adjacency streamed as bf16 in HBM
    acc_ref[...] += jnp.dot(a, xwn_ref[...], preferred_element_type=jnp.float32)

    @pl.when(k == pl.num_programs(1) - 1)
    def _epilogue():
        x = x_ref[...]                                                     # [TM, 38]

        # One packed MXU push for the self/feature terms of the row tile:
        #   cols 0..8  = (1+eps)*bn_scale * (x @ w1)   (BN-scaled self term)
        #   cols 9..17 = x @ wf                        (feats Linear, bias later)
        xp = jnp.dot(x, wpack_ref[...], preferred_element_type=jnp.float32)  # [TM, 18]
        self_gate = xp[:, :N_GROUPS]
        feat = xp[:, N_GROUPS:]

        c_gate = gv_ref[0:1, :]     # b1*bn_scale + bn_shift  (folded BN + bias)
        w2 = gv_ref[1:2, :]
        b2 = gv_ref[2:3, :]
        bf = gv_ref[3:4, :]

        # ReLU(BN(z)) -> Linear(1,1) -> ReLU, folded to per-gate scale/shift
        r = jnp.maximum(self_gate + acc_ref[...] + c_gate, 0.0)
        logits = jnp.maximum(r * w2 + b2, 0.0)                             # [TM, 9]

        # softmax over the 9 groups (reciprocal on the EUP)
        m = jnp.max(logits, axis=-1, keepdims=True)
        e = jnp.exp(logits - m)
        att = e * pl.reciprocal(jnp.sum(e, axis=-1, keepdims=True), approx=True)

        out = jnp.sum((feat + bf) * att, axis=-1, keepdims=True)           # [TM, 1]

        # lane-fused output block: [out | att | zero pad] -> single store stream
        pad = jnp.zeros((x.shape[0], OUT_LANES - 1 - N_GROUPS), jnp.float32)
        o_ref[...] = jnp.concatenate([out, att, pad], axis=-1)             # [TM, 16]


def _round_up(a, b):
    return ((a + b - 1) // b) * b


def _choose_tiles(n, tm_req, tk_req):
    """Static tile sizes and padded extents for rows (tm) and neighbours (tk)."""
    n8 = _round_up(max(n, 8), 8)

    # row tile: multiple of 16 (bf16 sublane-safe) unless a single block covers all rows
    if tm_req >= n8:
        tm, n_pad_r = n8, n8
    else:
        tm = max(16, _round_up(min(tm_req, 1024), 16))
        n_pad_r = _round_up(n8, tm)

    # contraction tile: multiple of 128 (lane-safe) unless a single block covers all cols
    if tk_req >= n8:
        tk, n_pad_c = n8, n8
    else:
        tk = max(128, _round_up(min(tk_req, 2048), 128))
        n_pad_c = _round_up(n8, tk)

    return tm, n_pad_r, tk, n_pad_c


@functools.partial(jax.jit, static_argnames=("tm", "tk"))
def my_attention_module4(x, adj, params, *, tm=512, tk=512):
    """x: [N, 38] float32, adj: [N, N] float32 dense adjacency (adj[i, j] = #edges j->i)."""
    n = x.shape[0]
    tm_eff, n_pad_r, tk_eff, n_pad_c = _choose_tiles(n, tm, tk)

    # ---- host-side folding / packing (tiny, outside the O(N^2) hot path) ----
    s_self = params["eps1p"] * params["bn_scale"]                             # [1, 9]
    c_gate = params["b1"] * params["bn_scale"] + params["bn_shift"]           # [1, 9]
    w_pack = jnp.concatenate([params["w1"] * s_self, params["wf"]], axis=1)   # [38, 18]
    gate_vecs = jnp.concatenate(
        [c_gate, params["w2"], params["b2"], params["bf"]], axis=0)           # [4, 9]

    # pad node dimensions to their tile sizes (zero rows/cols contribute nothing)
    x_r = jnp.pad(x, ((0, n_pad_r - n), (0, 0)))
    x_c = jnp.pad(x, ((0, n_pad_c - n), (0, 0)))
    adj_p = jnp.pad(adj, ((0, n_pad_r - n), (0, n_pad_c - n)))
    # bf16 adjacency: exact for small integer edge counts; halves HBM bytes on the
    # dominant stream.  TODO(synk): keep f32 if multigraph counts could exceed 256.
    adj_bf16 = adj_p.astype(jnp.bfloat16)
    # reassociated neighbour projection with bn_scale folded in: [n_pad_c, 9]
    xw_neigh = jnp.dot(x_c, params["w1"] * params["bn_scale"])

    grid = (n_pad_r // tm_eff, n_pad_c // tk_eff)
    combined = pl.pallas_call(
        _attention_kernel,
        out_shape=jax.ShapeDtypeStruct((n_pad_r, OUT_LANES), jnp.float32),
        grid=grid,
        in_specs=[
            pl.BlockSpec((tm_eff, N_FEAT), lambda i, k: (i, 0)),        # x row tile (resident over k)
            pl.BlockSpec((tm_eff, tk_eff), lambda i, k: (i, k)),        # A tile (bf16), streamed
            pl.BlockSpec((tk_eff, N_GROUPS), lambda i, k: (k, 0)),      # x @ (w1*bn_scale) tile
            pl.BlockSpec((N_FEAT, 2 * N_GROUPS), lambda i, k: (0, 0)),  # packed weights, resident
            pl.BlockSpec((4, N_GROUPS), lambda i, k: (0, 0)),           # gate vectors, resident
        ],
        out_specs=pl.BlockSpec((tm_eff, OUT_LANES), lambda i, k: (i, 0)),
        scratch_shapes=[pltpu.VMEM((tm_eff, N_GROUPS), jnp.float32)],   # neighbour accumulator
        compiler_params=pltpu.CompilerParams(
            dimension_semantics=("parallel", "arbitrary"),   # rows across TCs, reduction serial
            vmem_limit_bytes=32 * 1024 * 1024,
        ),
    )(x_r, adj_bf16, xw_neigh, w_pack, gate_vecs)

    out = combined[:n, 0:1]                                   # [N, 1]
    att = combined[:n, 1:1 + N_GROUPS]                        # [N, 9]
    # match torch: attention has trailing singleton dim -> [N, 9, 1]
    return out, att[:, :, None]


def make_params(key):
    """Deterministic parameter init matching the module's __init__ shapes (groupFeatures=1)."""
    ks = jax.random.split(key, 16)
    w1 = np.zeros((N_FEAT, N_GROUPS), np.float32)   # packed gate Linear(d_k, 1)
    wf = np.zeros((N_FEAT, N_GROUPS), np.float32)   # packed feats Linear(d_k, 1)
    off = 0
    w1_cols = jax.random.normal(ks[0], (N_FEAT,), jnp.float32) * 0.2
    wf_cols = jax.random.normal(ks[1], (N_FEAT,), jnp.float32) * 0.2
    for k, d in enumerate(GROUP_DIMS):
        w1[off:off + d, k] = np.asarray(w1_cols[off:off + d])
        wf[off:off + d, k] = np.asarray(wf_cols[off:off + d])
        off += d

    b1 = jax.random.normal(ks[2], (1, N_GROUPS), jnp.float32) * 0.1
    bf = jax.random.normal(ks[3], (1, N_GROUPS), jnp.float32) * 0.1
    w2 = jax.random.normal(ks[4], (1, N_GROUPS), jnp.float32) * 0.5
    b2 = jax.random.normal(ks[5], (1, N_GROUPS), jnp.float32) * 0.1

    # GIN eps (train_eps=True -> learnable scalar per gate)
    eps = jnp.arange(N_GROUPS, dtype=jnp.float32)[None, :] * 0.05
    eps1p = 1.0 + eps

    # BatchNorm1d(1) per gate, eval mode, folded to scale/shift
    gamma = 1.0 + 0.1 * jax.random.normal(ks[6], (1, N_GROUPS), jnp.float32)
    beta = 0.1 * jax.random.normal(ks[7], (1, N_GROUPS), jnp.float32)
    run_mean = 0.05 * jax.random.normal(ks[8], (1, N_GROUPS), jnp.float32)
    run_var = jnp.ones((1, N_GROUPS), jnp.float32)
    bn_eps = 1e-5
    bn_scale = gamma / jnp.sqrt(run_var + bn_eps)
    bn_shift = beta - run_mean * bn_scale

    return dict(
        w1=jnp.asarray(w1), b1=b1, eps1p=eps1p,
        bn_scale=bn_scale, bn_shift=bn_shift,
        w2=w2, b2=b2, wf=jnp.asarray(wf), bf=bf,
    )


def reference_jax(x, adj, p):
    """Pure-JAX reference of the torch-style math for a correctness check."""
    agg = adj @ x
    z = (x @ p["w1"]) * p["eps1p"] + (agg @ p["w1"]) + p["b1"]
    r = jnp.maximum(z * p["bn_scale"] + p["bn_shift"], 0.0)
    logits = jnp.maximum(r * p["w2"] + p["b2"], 0.0)
    att = jax.nn.softmax(logits, axis=-1)
    feat = x @ p["wf"] + p["bf"]
    out = jnp.sum(feat * att, axis=-1, keepdims=True)
    return out, att[:, :, None]


def _make_graph(key, n, e):
    k_x, k_e = jax.random.split(key, 2)
    x = jax.random.normal(k_x, (n, N_FEAT), jnp.float32)
    # random edge_index [2, E] (row 0 = source, row 1 = target)
    edge_index = jax.random.randint(k_e, (2, e), 0, n, dtype=jnp.int32)
    # dense adjacency for the scatter-add aggregation: A[target, source] += 1
    adj = jnp.zeros((n, n), jnp.float32).at[edge_index[1], edge_index[0]].add(1.0)
    return x, edge_index, adj


if __name__ == "__main__":
    key = jax.random.PRNGKey(0)
    k_g1, k_g2, k_p = jax.random.split(key, 3)
    params = make_params(k_p)

    # --- small graph, single-tile path (matches the module's tiny molecular graphs) ---
    N, E = 16, 32
    x, edge_index, adj = _make_graph(k_g1, N, E)
    batch = jnp.zeros((N,), jnp.int32)  # unused by forward (kept for signature parity)

    out, att = my_attention_module4(x, adj, params)
    jax.block_until_ready((out, att))

    ref_out, ref_att = reference_jax(x, adj, params)
    # Tolerance loosened from 1e-5: approx reciprocal in the softmax (EUP) and the
    # reassociated f32 aggregation change rounding slightly; values are O(1).
    np.testing.assert_allclose(np.asarray(out), np.asarray(ref_out), rtol=2e-3, atol=2e-3)
    np.testing.assert_allclose(np.asarray(att), np.asarray(ref_att), rtol=2e-3, atol=2e-3)
    assert out.shape == (N, 1) and att.shape == (N, N_GROUPS, 1)

    # --- larger graph with small forced tiles: exercises the 2-D grid / accumulator path ---
    N2, E2 = 200, 600
    x2, _, adj2 = _make_graph(k_g2, N2, E2)
    out2, att2 = my_attention_module4(x2, adj2, params, tm=64, tk=128)
    jax.block_until_ready((out2, att2))
    ref_out2, ref_att2 = reference_jax(x2, adj2, params)
    np.testing.assert_allclose(np.asarray(out2), np.asarray(ref_out2), rtol=2e-3, atol=2e-3)
    np.testing.assert_allclose(np.asarray(att2), np.asarray(ref_att2), rtol=2e-3, atol=2e-3)
    assert out2.shape == (N2, 1) and att2.shape == (N2, N_GROUPS, 1)

    print("KERNEL_OK")
</pallas_src>

<mosaic_0001>
module attributes {stable_mosaic.version = 11 : i64} {
  func.func @_attention_kernel(%arg0: i32, %arg1: i32, %arg2: memref<16x38xf32, #tpu.memory_space<vmem>>, %arg3: memref<16x16xbf16, #tpu.memory_space<vmem>>, %arg4: memref<16x9xf32, #tpu.memory_space<vmem>>, %arg5: memref<38x18xf32, #tpu.memory_space<vmem>>, %arg6: memref<4x9xf32, #tpu.memory_space<vmem>>, %arg7: memref<16x16xf32, #tpu.memory_space<vmem>>, %arg8: memref<16x9xf32, #tpu.memory_space<vmem>>) attributes {dimension_semantics = [#tpu.dimension_semantics<parallel>, #tpu.dimension_semantics<arbitrary>], iteration_bounds = array<i64: 1, 1>, scalar_prefetch = 0 : i64, scratch_operands = 1 : i64, tpu.core_type = #tpu.core_type<tc>, window_params = [{transform_indices = @transform_0, window_bounds = array<i64: 16, 38>}, {transform_indices = @transform_1, window_bounds = array<i64: 16, 16>}, {transform_indices = @transform_2, window_bounds = array<i64: 16, 9>}, {pipeline_mode = #tpu.pipeline_mode<synchronous>, transform_indices = @transform_3, window_bounds = array<i64: 38, 18>}, {pipeline_mode = #tpu.pipeline_mode<synchronous>, transform_indices = @transform_4, window_bounds = array<i64: 4, 9>}, {transform_indices = @transform_5, window_bounds = array<i64: 16, 16>}]} {
    %c0_i32 = arith.constant 0 : i32
    %0 = arith.cmpi eq, %arg1, %c0_i32 : i32
    %1 = arith.extui %0 : i1 to i32
    %c0_i32_0 = arith.constant 0 : i32
    %2 = arith.cmpi ne, %1, %c0_i32_0 : i32
    scf.if %2 {
      %cst_10 = arith.constant 0.000000e+00 : f32
      %13 = vector.broadcast %cst_10 : f32 to vector<16x9xf32>
      %c0_11 = arith.constant 0 : index
      %c0_12 = arith.constant 0 : index
      %14 = vector.load %arg8[%c0_11, %c0_12] : memref<16x9xf32, #tpu.memory_space<vmem>>, vector<16x9xf32>
      tpu.vector_store %arg8[%c0_11, %c0_12], %13 {strides = array<i32>} : memref<16x9xf32, #tpu.memory_space<vmem>>, vector<16x9xf32>,
    } else {
    }
    %c0 = arith.constant 0 : index
    %c0_1 = arith.constant 0 : index
    %3 = vector.load %arg3[%c0, %c0_1] : memref<16x16xbf16, #tpu.memory_space<vmem>>, vector<16x16xbf16>
    %4 = arith.extf %3 : vector<16x16xbf16> to vector<16x16xf32>
    %c0_2 = arith.constant 0 : index
    %c0_3 = arith.constant 0 : index
    %5 = vector.load %arg8[%c0_2, %c0_3] : memref<16x9xf32, #tpu.memory_space<vmem>>, vector<16x9xf32>
    %c0_4 = arith.constant 0 : index
    %c0_5 = arith.constant 0 : index
    %6 = vector.load %arg4[%c0_4, %c0_5] : memref<16x9xf32, #tpu.memory_space<vmem>>, vector<16x9xf32>
    %cst = arith.constant dense<0.000000e+00> : vector<16x9xf32>
    %7 = tpu.matmul %4, %6, %cst {dimension_numbers = #tpu.dot_dimension_numbers<[1], [0], [0], [1], [0, 0, 1, 1], [], []>} : vector<16x16xf32>, vector<16x9xf32>, vector<16x9xf32> -> vector<16x9xf32>
    %8 = arith.addf %5, %7 : vector<16x9xf32>
    %c0_6 = arith.constant 0 : index
    %c0_7 = arith.constant 0 : index
    %9 = vector.load %arg8[%c0_6, %c0_7] : memref<16x9xf32, #tpu.memory_space<vmem>>, vector<16x9xf32>
    tpu.vector_store %arg8[%c0_6, %c0_7], %8 {strides = array<i32>} : memref<16x9xf32, #tpu.memory_space<vmem>>, vector<16x9xf32>,
    %c0_i32_8 = arith.constant 0 : i32
    %10 = arith.cmpi eq, %arg1, %c0_i32_8 : i32
    %11 = arith.extui %10 : i1 to i32
    %c0_i32_9 = arith.constant 0 : i32
    %12 = arith.cmpi ne, %11, %c0_i32_9 : i32
    scf.if %12 {
      %c0_10 = arith.constant 0 : index
      %c0_11 = arith.constant 0 : index
      %13 = vector.load %arg2[%c0_10, %c0_11] : memref<16x38xf32, #tpu.memory_space<vmem>>, vector<16x38xf32>
      %c0_12 = arith.constant 0 : index
      %c0_13 = arith.constant 0 : index
      %14 = vector.load %arg5[%c0_12, %c0_13] : memref<38x18xf32, #tpu.memory_space<vmem>>, vector<38x18xf32>
      %cst_14 = arith.constant dense<0.000000e+00> : vector<16x18xf32>
      %15 = tpu.matmul %13, %14, %cst_14 {dimension_numbers = #tpu.dot_dimension_numbers<[1], [0], [0], [1], [0, 0, 1, 1], [], []>} : vector<16x38xf32>, vector<38x18xf32>, vector<16x18xf32> -> vector<16x18xf32>
      %16 = vector.extract_strided_slice %15 {offsets = [0, 0], sizes = [16, 9], strides = [1, 1]} : vector<16x18xf32> to vector<16x9xf32>
      %17 = vector.extract_strided_slice %15 {offsets = [0, 9], sizes = [16, 9], strides = [1, 1]} : vector<16x18xf32> to vector<16x9xf32>
      %c0_15 = arith.constant 0 : index
      %c0_16 = arith.constant 0 : index
      %18 = vector.load %arg6[%c0_15, %c0_16] : memref<4x9xf32, #tpu.memory_space<vmem>>, vector<1x9xf32>
      %c1 = arith.constant 1 : index
      %c0_17 = arith.constant 0 : index
      %19 = vector.load %arg6[%c1, %c0_17] : memref<4x9xf32, #tpu.memory_space<vmem>>, vector<1x9xf32>
      %c2 = arith.constant 2 : index
      %c0_18 = arith.constant 0 : index
      %20 = vector.load %arg6[%c2, %c0_18] : memref<4x9xf32, #tpu.memory_space<vmem>>, vector<1x9xf32>
      %c3 = arith.constant 3 : index
      %c0_19 = arith.constant 0 : index
      %21 = vector.load %arg6[%c3, %c0_19] : memref<4x9xf32, #tpu.memory_space<vmem>>, vector<1x9xf32>
      %c0_20 = arith.constant 0 : index
      %c0_21 = arith.constant 0 : index
      %22 = vector.load %arg8[%c0_20, %c0_21] : memref<16x9xf32, #tpu.memory_space<vmem>>, vector<16x9xf32>
      %23 = arith.addf %16, %22 : vector<16x9xf32>
      %24 = vector.broadcast %18 : vector<1x9xf32> to vector<16x9xf32>
      %25 = arith.addf %23, %24 : vector<16x9xf32>
      %cst_22 = arith.constant 0.000000e+00 : f32
      %26 = vector.broadcast %cst_22 : f32 to vector<16x9xf32>
      %27 = arith.maximumf %25, %26 : vector<16x9xf32>
      %28 = vector.broadcast %19 : vector<1x9xf32> to vector<16x9xf32>
      %29 = arith.mulf %27, %28 : vector<16x9xf32>
      %30 = vector.broadcast %20 : vector<1x9xf32> to vector<16x9xf32>
      %31 = arith.addf %29, %30 : vector<16x9xf32>
      %cst_23 = arith.constant 0.000000e+00 : f32
      %32 = vector.broadcast %cst_23 : f32 to vector<16x9xf32>
      %33 = arith.maximumf %31, %32 : vector<16x9xf32>
      %cst_24 = arith.constant dense<0xFF800000> : vector<16xf32>
      %34 = vector.multi_reduction <maximumf>, %33, %cst_24 [1] : vector<16x9xf32> to vector<16xf32>
      %35 = vector.shape_cast %34 : vector<16xf32> to vector<16x1xf32>
      %36 = vector.broadcast %35 : vector<16x1xf32> to vector<16x9xf32>
      %37 = arith.subf %33, %36 : vector<16x9xf32>
      %38 = math.exp %37 : vector<16x9xf32>
      %cst_25 = arith.constant dense<0.000000e+00> : vector<16xf32>
      %39 = vector.multi_reduction <add>, %38, %cst_25 [1] : vector<16x9xf32> to vector<16xf32>
      %40 = vector.shape_cast %39 : vector<16xf32> to vector<16x1xf32>
      %41 = tpu.reciprocal %40 {approx = true} : vector<16x1xf32> -> vector<16x1xf32>
      %42 = vector.broadcast %41 : vector<16x1xf32> to vector<16x9xf32>
      %43 = arith.mulf %38, %42 : vector<16x9xf32>
      %44 = vector.broadcast %21 : vector<1x9xf32> to vector<16x9xf32>
      %45 = arith.addf %17, %44 : vector<16x9xf32>
      %46 = arith.mulf %45, %43 : vector<16x9xf32>
      %cst_26 = arith.constant dense<0.000000e+00> : vector<16xf32>
      %47 = vector.multi_reduction <add>, %46, %cst_26 [1] : vector<16x9xf32> to vector<16xf32>
      %48 = vector.shape_cast %47 : vector<16xf32> to vector<16x1xf32>
      %cst_27 = arith.constant 0.000000e+00 : f32
      %49 = vector.broadcast %cst_27 : f32 to vector<16x6xf32>
      %50 = tpu.concatenate %48, %43, %49 in 1 : vector<16x1xf32>, vector<16x9xf32>, vector<16x6xf32> -> vector<16x16xf32>
      %c0_28 = arith.constant 0 : index
      %c0_29 = arith.constant 0 : index
      %51 = vector.load %arg7[%c0_28, %c0_29] : memref<16x16xf32, #tpu.memory_space<vmem>>, vector<16x16xf32>
      tpu.vector_store %arg7[%c0_28, %c0_29], %50 {strides = array<i32>} : memref<16x16xf32, #tpu.memory_space<vmem>>, vector<16x16xf32>,
    } else {
    }
    return
  }
  func.func @transform_0(%arg0: i32, %arg1: i32) -> (i32, i32) {
    %c0_i32 = arith.constant 0 : i32
    %c0_i32_0 = arith.constant 0 : i32
    return %arg0, %c0_i32 : i32, i32
  }
  func.func @transform_1(%arg0: i32, %arg1: i32) -> (i32, i32) {
    %c0_i32 = arith.constant 0 : i32
    return %arg0, %arg1 : i32, i32
  }
  func.func @transform_2(%arg0: i32, %arg1: i32) -> (i32, i32) {
    %c0_i32 = arith.constant 0 : i32
    %c0_i32_0 = arith.constant 0 : i32
    return %arg1, %c0_i32 : i32, i32
  }
  func.func @transform_3(%arg0: i32, %arg1: i32) -> (i32, i32) {
    %c0_i32 = arith.constant 0 : i32
    %c0_i32_0 = arith.constant 0 : i32
    %c0_i32_1 = arith.constant 0 : i32
    return %c0_i32, %c0_i32_0 : i32, i32
  }
  func.func @transform_4(%arg0: i32, %arg1: i32) -> (i32, i32) {
    %c0_i32 = arith.constant 0 : i32
    %c0_i32_0 = arith.constant 0 : i32
    %c0_i32_1 = arith.constant 0 : i32
    return %c0_i32, %c0_i32_0 : i32, i32
  }
  func.func @transform_5(%arg0: i32, %arg1: i32) -> (i32, i32) {
    %c0_i32 = arith.constant 0 : i32
    %c0_i32_0 = arith.constant 0 : i32
    return %arg0, %c0_i32 : i32, i32
  }
}

</mosaic_0001>

<llo_original>
// kernel: my_attention_module4.1
$region0: #{my_attention_module4.1}
  #allocation0 [shape = 'u32[]', space=smem, size = 0x4, offset = 0x4, fixed_abs, tag = 'smem constant byte address 0x4 - core index']
  #allocation1 [shape = 'u32[144,128]{1,0:T(1,128)}', space=vmem, size = 0x12000, scoped, tag = 'internal scratch']
  #allocation2 [shape = 'f32[16,9]{1,0:T(8,128)}', space=vmem, size = 0x2000, scoped, tag = 'scratch operand']
  %s0 = inlined_call_operand.vmem [shape: f32[16,38], index: 0, kind: input, shape index: {}]
  %s1 = inlined_call_operand.vmem [shape: bf16[16,16], index: 1, kind: input, shape index: {}]
  %s2 = inlined_call_operand.vmem [shape: f32[16,9], index: 2, kind: input, shape index: {}]
  %s3 = inlined_call_operand.vmem [shape: f32[38,18], index: 3, kind: input, shape index: {}]
  %s4 = inlined_call_operand.vmem [shape: f32[4,9], index: 4, kind: input, shape index: {}]
  %s5 = inlined_call_operand.vmem [shape: f32[16,16], index: 5, kind: output, shape index: {}]
  %s6 = sld [smem:[#allocation0]]
  $region38: #{my_attention_module4.1} parent=0
    _
  %s8 = ssub.s32 1, %s6
  %s9 = scalar_select 0, %s8, %s6
  // Predicated region
  $region2: #{my_attention_module4.1} parent=0 // pred_check
    _
  $region3: #{my_attention_module4.1} parent=0 // pred_check_branch
    %11 = sbr.rel (0) target = $region5
  $region4: #{my_attention_module4.1} parent=0 // pred_region
    _
  $region5: #{my_attention_module4.1} parent=0 // pred_fallthru
    _
  // Predicated region
  $region6: #{my_attention_module4.1} parent=0 // pred_check
    _
  $region7: #{my_attention_module4.1} parent=0 // pred_check_branch
    %13 = sbr.rel (0) target = $region9
  $region8: #{my_attention_module4.1} parent=0 // pred_region
    _
  $region9: #{my_attention_module4.1} parent=0 // pred_fallthru
    _
  // Predicated region
  $region10: #{my_attention_module4.1} parent=0 // pred_check
    _
  $region11: #{my_attention_module4.1} parent=0 // pred_check_branch
    %15 = sbr.rel (0) target = $region13
  $region12: #{my_attention_module4.1} parent=0 // pred_region
    _
  $region13: #{my_attention_module4.1} parent=0 // pred_fallthru
    _
  // Predicated region
  $region14: #{my_attention_module4.1} parent=0 // pred_check
    _
  $region15: #{my_attention_module4.1} parent=0 // pred_check_branch
    %17 = sbr.rel (0) target = $region17
  $region16: #{my_attention_module4.1} parent=0 // pred_region
    _
  $region17: #{my_attention_module4.1} parent=0 // pred_fallthru
    _
  // Predicated region
  $region18: #{my_attention_module4.1} parent=0 // pred_check
    _
  $region19: #{my_attention_module4.1} parent=0 // pred_check_branch
    %19 = sbr.rel (0) target = $region21
  $region20: #{my_attention_module4.1} parent=0 // pred_region
    _
  $region21: #{my_attention_module4.1} parent=0 // pred_fallthru
    _
  %p20 = scmp.eq.s32.totalorder 0, 0
  // Predicated region
  $region22: #{my_attention_module4.1} parent=0 // pred_check
    %p21 = pneg %p20
  $region23: #{my_attention_module4.1} parent=0 // pred_check_branch
    %23 = sbr.rel (%p21) target = $region25
  $region24: #{my_attention_module4.1} parent=0 // pred_region
    %vm24 = vcmask 72704
    %25 = vst.msk [vmem:[#allocation2] sm:$0xff] %vm24, 0.0
    %26 = vst.msk [vmem:[#allocation2 + $0x8] sm:$0xff] %vm24, 0.0
  $region25: #{my_attention_module4.1} parent=0 // pred_fallthru
    _
  %v27 = vld [vmem:[%s1] sm:$0xf]
  %v28 = vld [vmem:[%s1 + $0x4] sm:$0xf]
  %v29 = vunpack.c.l.bf16 %v27
  %v30 = vunpack.c.l.bf16 %v28
  %v31 = vld [vmem:[#allocation2] sm:$0xff]
  %v32 = vld [vmem:[#allocation2 + $0x8] sm:$0xff]
  %v33 = vld [vmem:[%s2] sm:$0xff]
  %v34 = vld [vmem:[%s2 + $0x8] sm:$0xff]
  %vm35 = vcmask 130048
  %v37 = vsel %vm35, %v29, 0
  %v40 = vsel %vm35, %v30, 0
  %42 = vmatprep.subr.mxu0 0.0
  %43 = vmatpush1.msra.mxu0 0.0
  %44 = vmatprep.subr.mxu0 0.0
  %45 = vmatpush1.msra.mxu0 0.0
  %46 = vmatprep.subr.mxu0 0.0
  %47 = vmatpush1.msra.mxu0 0.0
  %48 = vmatprep.subr.mxu0 0.0
  %49 = vmatpush1.msra.mxu0 0.0
  %50 = vmatprep.subr.mxu0 0.0
  %51 = vmatpush1.msra.mxu0 0.0
  %52 = vmatprep.subr.mxu0 0.0
  %53 = vmatpush1.msra.mxu0 0.0
  %54 = vmatprep.subr.mxu0 0.0
  %55 = vmatpush1.msra.mxu0 0.0
  %56 = vmatprep.subr.mxu0 0.0
  %57 = vmatpush1.msra.mxu0 0.0
  %58 = vmatprep.subr.mxu0 0.0
  %59 = vmatpush1.msra.mxu0 0.0
  %60 = vmatprep.subr.mxu0 0.0
  %61 = vmatpush1.msra.mxu0 0.0
  %62 = vmatprep.subr.mxu0 0.0
  %63 = vmatpush1.msra.mxu0 0.0
  %64 = vmatprep.subr.mxu0 0.0
  %65 = vmatpush1.msra.mxu0 0.0
  %66 = vmatprep.subr.mxu0 0.0
  %67 = vmatpush1.msra.mxu0 0.0
  %68 = vmatprep.subr.mxu0 0.0
  %69 = vmatpush1.msra.mxu0 0.0
  %70 = vmatprep.subr.mxu0 0.0
  %71 = vmatpush1.msra.mxu0 %v34
  %72 = vmatprep.subr.mxu0 0.0
  %73 = vmatpush1.msra.mxu0 %v33
  %74 = vmatprep.subr.mxu0 0.0
  %75 = vmatpush2.msra.mxu0 0.0
  %76 = vmatprep.subr.mxu0 0.0
  %77 = vmatpush2.msra.mxu0 0.0
  %78 = vmatprep.subr.mxu0 0.0
  %79 = vmatpush2.msra.mxu0 0.0
  %80 = vmatprep.subr.mxu0 0.0
  %81 = vmatpush2.msra.mxu0 0.0
  %82 = vmatprep.subr.mxu0 0.0
  %83 = vmatpush2.msra.mxu0 0.0
  %84 = vmatprep.subr.mxu0 0.0
  %85 = vmatpush2.msra.mxu0 0.0
  %86 = vmatprep.subr.mxu0 0.0
  %87 = vmatpush2.msra.mxu0 0.0
  %88 = vmatprep.subr.mxu0 0.0
  %89 = vmatpush2.msra.mxu0 0.0
  %90 = vmatprep.subr.mxu0 0.0
  %91 = vmatpush2.msra.mxu0 0.0
  %92 = vmatprep.subr.mxu0 0.0
  %93 = vmatpush2.msra.mxu0 0.0
  %94 = vmatprep.subr.mxu0 0.0
  %95 = vmatpush2.msra.mxu0 0.0
  %96 = vmatprep.subr.mxu0 0.0
  %97 = vmatpush2.msra.mxu0 0.0
  %98 = vmatprep.subr.mxu0 0.0
  %99 = vmatpush2.msra.mxu0 0.0
  %100 = vmatprep.subr.mxu0 0.0
  %101 = vmatpush2.msra.mxu0 0.0
  %102 = vmatprep.subr.mxu0 0.0
  %103 = vmatpush2.msra.mxu0 0.0
  %104 = vmatprep.subr.mxu0 0.0
  %105 = vmatpush2.msra.mxu0 0.0
  %106 = vmatprep.mubr.f32.mxu0 0.0
  %107 = vmatmul.mubr.f32.gmra.mxu0 %v37
  %v108 = vpop.f32.mrf.mxu0
  %v109 = vadd.f32 0.0, %v108
  %v110 = vpop.f32.mrf.mxu0
  %111 = vmatprep.mubr.f32.mxu0 0.0
  %112 = vmatmul.mubr.f32.gmra.mxu0 %v40
  %v113 = vpop.f32.mrf.mxu0
  %v114 = vadd.f32 0.0, %v113
  %v115 = vpop.f32.mrf.mxu0
  %116 = vdwg.mxu0
  %v117 = vadd.f32 %v31, %v109
  %v118 = vadd.f32 %v32, %v114
  %vm119 = vcmask 72704
  %120 = vst.msk [vmem:[#allocation2] sm:$0xff] %vm119, %v117
  %121 = vst.msk [vmem:[#allocation2 + $0x8] sm:$0xff] %vm119, %v118
  // Predicated region
  $region26: #{my_attention_module4.1} parent=0 // pred_check
    %p122 = pneg %p20
  $region27: #{my_attention_module4.1} parent=0 // pred_check_branch
    %124 = sbr.rel (%p122) target = $region29
  $region28: #{my_attention_module4.1} parent=0 // pred_region
    %v125 = vld [vmem:[%s0] sm:$0xff]
    %v126 = vld [vmem:[%s0 + $0x8] sm:$0xff]
    %v127 = vld [vmem:[%s3] sm:$0xff]
    %v128 = vld [vmem:[%s3 + $0x8] sm:$0xff]
    %v129 = vld [vmem:[%s3 + $0x10] sm:$0xff]
    %v130 = vld [vmem:[%s3 + $0x18] sm:$0xff]
    %v131 = vld [vmem:[%s3 + $0x20] sm:$0x3f]
    %vm132 = vcmask 310272
    %v134 = vsel %vm132, %v125, 0
    %v137 = vsel %vm132, %v126, 0
    %vm139 = vcmask 1045504
    %v141 = vsel %vm139, %v131, 0
    %143 = vmatprep.subr.mxu0 0.0
    %144 = vmatpush1.msra.mxu0 0.0
    %145 = vmatprep.subr.mxu0 0.0
    %146 = vmatpush1.msra.mxu0 0.0
    %147 = vmatprep.subr.mxu0 0.0
    %148 = vmatpush1.msra.mxu0 0.0
    %149 = vmatprep.subr.mxu0 0.0
    %150 = vmatpush1.msra.mxu0 0.0
    %151 = vmatprep.subr.mxu0 0.0
    %152 = vmatpush1.msra.mxu0 0.0
    %153 = vmatprep.subr.mxu0 0.0
    %154 = vmatpush1.msra.mxu0 0.0
    %155 = vmatprep.subr.mxu0 0.0
    %156 = vmatpush1.msra.mxu0 0.0
    %157 = vmatprep.subr.mxu0 0.0
    %158 = vmatpush1.msra.mxu0 0.0
    %159 = vmatprep.subr.mxu0 0.0
    %160 = vmatpush1.msra.mxu0 0.0
    %161 = vmatprep.subr.mxu0 0.0
    %162 = vmatpush1.msra.mxu0 0.0
    %163 = vmatprep.subr.mxu0 0.0
    %164 = vmatpush1.msra.mxu0 0.0
    %165 = vmatprep.subr.mxu0 0.0
    %166 = vmatpush1.msra.mxu0 %v141
    %167 = vmatprep.subr.mxu0 0.0
    %168 = vmatpush1.msra.mxu0 %v130
    %169 = vmatprep.subr.mxu0 0.0
    %170 = vmatpush1.msra.mxu0 %v129
    %171 = vmatprep.subr.mxu0 0.0
    %172 = vmatpush1.msra.mxu0 %v128
    %173 = vmatprep.subr.mxu0 0.0
    %174 = vmatpush1.msra.mxu0 %v127
    %175 = vmatprep.subr.mxu0 0.0
    %176 = vmatpush2.msra.mxu0 0.0
    %177 = vmatprep.subr.mxu0 0.0
    %178 = vmatpush2.msra.mxu0 0.0
    %179 = vmatprep.subr.mxu0 0.0
    %180 = vmatpush2.msra.mxu0 0.0
    %181 = vmatprep.subr.mxu0 0.0
    %182 = vmatpush2.msra.mxu0 0.0
    %183 = vmatprep.subr.mxu0 0.0
    %184 = vmatpush2.msra.mxu0 0.0
    %185 = vmatprep.subr.mxu0 0.0
    %186 = vmatpush2.msra.mxu0 0.0
    %187 = vmatprep.subr.mxu0 0.0
    %188 = vmatpush2.msra.mxu0 0.0
    %189 = vmatprep.subr.mxu0 0.0
    %190 = vmatpush2.msra.mxu0 0.0
    %191 = vmatprep.subr.mxu0 0.0
    %192 = vmatpush2.msra.mxu0 0.0
    %193 = vmatprep.subr.mxu0 0.0
    %194 = vmatpush2.msra.mxu0 0.0
    %195 = vmatprep.subr.mxu0 0.0
    %196 = vmatpush2.msra.mxu0 0.0
    %197 = vmatprep.subr.mxu0 0.0
    %198 = vmatpush2.msra.mxu0 0.0
    %199 = vmatprep.subr.mxu0 0.0
    %200 = vmatpush2.msra.mxu0 0.0
    %201 = vmatprep.subr.mxu0 0.0
    %202 = vmatpush2.msra.mxu0 0.0
    %203 = vmatprep.subr.mxu0 0.0
    %204 = vmatpush2.msra.mxu0 0.0
    %205 = vmatprep.subr.mxu0 0.0
    %206 = vmatpush2.msra.mxu0 0.0
    %207 = vmatprep.mubr.f32.mxu0 0.0
    %208 = vmatmul.mubr.f32.gmra.mxu0 %v134
    %v209 = vpop.f32.mrf.mxu0
    %v210 = vadd.f32 0.0, %v209
    %v211 = vpop.f32.mrf.mxu0
    %212 = vmatprep.mubr.f32.mxu0 0.0
    %213 = vmatmul.mubr.f32.gmra.mxu0 %v137
    %v214 = vpop.f32.mrf.mxu0
    %v215 = vadd.f32 0.0, %v214
    %v216 = vpop.f32.mrf.mxu0
    %217 = vdwg.mxu0
    %v218 = vld [vmem:[%s4] sm:$0x1]
    %v219 = vld [vmem:[%s4 + $0x1] sm:$0x1]
    %v220 = vld [vmem:[%s4 + $0x2] sm:$0x1]
    %v221 = vld [vmem:[%s4 + $0x3] sm:$0x1]
    %v222 = vld [vmem:[#allocation2] sm:$0xff]
    %v223 = vld [vmem:[#allocation2 + $0x8] sm:$0xff]
    %v224 = vadd.f32 %v210, %v222
    %v225 = vadd.f32 %v215, %v223
    %v226 = vlaneseq
    %v227 = vshrl.u32 %v226, 7
    %v228 = vsub.s32 0, %v227
    %v229 = vrot.slane %v218, %v228
    %v230 = vadd.f32 %v224, %v229
    %v231 = vadd.f32 %v225, %v229
    %v232 = vmax.f32 %v230, 0.0
    %v233 = vmax.f32 %v231, 0.0
    %v234 = vlaneseq
    %v235 = vshrl.u32 %v234, 7
    %v236 = vsub.s32 0, %v235
    %v237 = vrot.slane %v219, %v236
    %v238 = vmul.f32 %v232, %v237
    %v239 = vmul.f32 %v233, %v237
    %v240 = vlaneseq
    %v241 = vshrl.u32 %v240, 7
    %v242 = vsub.s32 0, %v241
    %v243 = vrot.slane %v220, %v242
    %v244 = vadd.f32 %v238, %v243
    %v245 = vadd.f32 %v239, %v243
    %v246 = vmax.f32 %v244, 0.0
    %v247 = vmax.f32 %v245, 0.0
    %v248 = vsel %vm119, %v246, -inf
    %249 = vmax.xlane.f32.xlu0 %v248
    %v250 = vpop.xlane.xlu0 %249
    %v251 = vsel %vm119, %v247, -inf
    %252 = vmax.xlane.f32.xlu0 %v251
    %v253 = vpop.xlane.xlu0 %252
    %v254 = vsub.f32 %v246, %v250
    %v255 = vsub.f32 %v247, %v253
    %v256 = vmul.f32 %v254, 1.442695
    %v257 = vpow.pop %v256
    %v258 = vmul.f32 %v255, 1.442695
    %v259 = vpow.pop %v258
    %v260 = vsel %vm119, %v257, 0.0
    %261 = vadd.xlane.f32.xlu0 %v260
    %v262 = vpop.xlane.xlu0 %261
    %v263 = vsel %vm119, %v259, 0.0
    %264 = vadd.xlane.f32.xlu0 %v263
    %v265 = vpop.xlane.xlu0 %264
    %v266 = vrcp.pop %v262
    %v267 = vrcp.pop %v265
    %v268 = vmul.f32 %v257, %v266
    %v269 = vmul.f32 %v259, %v267
    %v270 = vlaneseq
    %v271 = vshrl.u32 %v270, 7
    %v272 = vsub.s32 0, %v271
    %v273 = vrot.slane %v221, %v272
    %275 = vrot.lane.b32.xlu0 %v273, 9
    %v276 = vpop.permute.xlu0 %275
    %v278 = vadd.f32 %v210, %v276
    %v279 = vadd.f32 %v215, %v276
    %282 = vrot.lane.b32.xlu0 %v268, 9
    %v283 = vpop.permute.xlu0 %282
    %284 = vrot.lane.b32.xlu0 %v269, 9
    %v285 = vpop.permute.xlu0 %284
    %v288 = vmul.f32 %v278, %v283
    %v289 = vmul.f32 %v279, %v285
    %292 = vrot.lane.b32.xlu0 %v288, 119
    %v293 = vpop.permute.xlu0 %292
    %294 = vrot.lane.b32.xlu0 %v289, 119
    %v295 = vpop.permute.xlu0 %294
    %v298 = vsel %vm119, %v293, 0.0
    %299 = vadd.xlane.f32.xlu0 %v298
    %v300 = vpop.xlane.xlu0 %299
    %v301 = vsel %vm119, %v295, 0.0
    %302 = vadd.xlane.f32.xlu0 %v301
    %v303 = vpop.xlane.xlu0 %302
    %304 = vrot.lane.b32.xlu0 %v268, 1
    %v305 = vpop.permute.xlu0 %304
    %306 = vrot.lane.b32.xlu0 %v269, 1
    %v307 = vpop.permute.xlu0 %306
    %vm310 = vcmask 7168
    %v311 = vsel %vm310, %v300, %v305
    %v312 = vsel %vm310, %v303, %v307
    %vm313 = vcmask 80896
    %v314 = vsel %vm313, %v311, 0.0
    %v315 = vsel %vm313, %v312, 0.0
    %316 = vst.msk [vmem:[%s5] sm:$0xff] %vm35, %v314
    %317 = vst.msk [vmem:[%s5 + $0x8] sm:$0xff] %vm35, %v315
  $region29: #{my_attention_module4.1} parent=0 // pred_fallthru
    _
  // Predicated region
  $region30: #{my_attention_module4.1} parent=0 // pred_check
    _
  $region31: #{my_attention_module4.1} parent=0 // pred_check_branch
    %319 = sbr.rel (0) target = $region33
  $region32: #{my_attention_module4.1} parent=0 // pred_region
    _
  $region33: #{my_attention_module4.1} parent=0 // pred_fallthru
    _
  // Predicated region
  $region34: #{my_attention_module4.1} parent=0 // pred_check
    _
  $region35: #{my_attention_module4.1} parent=0 // pred_check_branch
    %321 = sbr.rel (0) target = $region37
  $region36: #{my_attention_module4.1} parent=0 // pred_region
    _
  $region37: #{my_attention_module4.1} parent=0 // pred_fallthru
    _

</llo_original>
